<compile_context>
chip_gen: v7x
topology: tpu7x:2x2x1
jax: 0.10.0
libtpu: 0.0.40
codegen_flags: <defaults>
</compile_context>

<pallas_src>
import functools

import jax
import jax.numpy as jnp
from jax.experimental import pallas as pl
from jax.experimental.pallas import tpu as pltpu

BN_EPS = 1e-5
LANE = 128


def refine_block_kernel(x_ref, w_ref, gb_ref, o_ref):
    # x_ref:  (N, C_in)   f32 (cast to the weight dtype in-kernel for the MXU)
    # w_ref:  (C_in, TN)  bf16 (pre-cast at init) -- one C_out tile of W^T
    # gb_ref: (2, TN)     f32  -- row 0 = gamma, row 1 = beta
    # o_ref:  (N, TN)     f32 (or bf16)
    x = x_ref[...].astype(w_ref.dtype)
    w = w_ref[...]

    # Linear (bias dropped: it is cancelled exactly by the BN mean subtraction).
    y = jnp.dot(x, w, preferred_element_type=jnp.float32)

    # BatchNorm1d, training-mode batch statistics, two-pass (stable) variance.
    inv_n = 1.0 / y.shape[0]
    mean = jnp.sum(y, axis=0, keepdims=True) * inv_n
    d = y - mean
    var = jnp.sum(d * d, axis=0, keepdims=True) * inv_n

    gb = gb_ref[...]
    gamma = gb[0:1, :]
    beta = gb[1:2, :]
    scale = gamma * jax.lax.rsqrt(var + BN_EPS)

    # (y - mean) * scale + beta, then ReLU.
    o_ref[...] = jnp.maximum(d * scale + beta, 0.0).astype(o_ref.dtype)


@functools.lru_cache(maxsize=None)
def _vmem_budget_bytes():
    """~80% of this generation's physical VMEM (v5e/v6e: 128 MiB, v7x: 64 MiB)."""
    cap = 128 << 20
    try:
        info = pltpu.get_tpu_info()
        cap = int(getattr(info, "vmem_capacity_bytes", cap)) or cap
    except Exception:
        pass
    return int(cap * 0.8)


def _per_step_vmem_bytes(n, c_in, tn, w_bytes, out_bytes):
    return (n * c_in * 4                   # resident x block (f32)
            + 2 * (c_in * tn * w_bytes)    # double-buffered weight tile
            + 2 * (2 * tn * 4)             # double-buffered gamma/beta tile
            + 2 * (n * tn * out_bytes))    # double-buffered output tile


def _pick_tile(n, c_in, c_pad, w_bytes, out_bytes, budget):
    tn = LANE
    for cand in (1024, 512, 256, 128):
        if c_pad % cand:
            continue
        if _per_step_vmem_bytes(n, c_in, cand, w_bytes, out_bytes) <= budget // 2:
            tn = cand
            break
    # Keep >=2 grid steps when possible so both v7x TensorCores (and the
    # v5e/v6e megacore split) get work under dimension_semantics=('parallel',).
    while tn > LANE and c_pad // tn < 2:
        tn //= 2
    return tn


@functools.partial(jax.jit, static_argnames=("c_out", "out_dtype"))
def refine_block(x, w_pad, gb_pad, *, c_out, out_dtype=jnp.float32):
    """Fused Linear -> BatchNorm1d(training stats) -> ReLU.

    x:      (N, C_in) float32
    w_pad:  (C_in, C_pad) bf16 (or f32), pre-transposed + lane-padded at init
    gb_pad: (2, C_pad) float32, rows = (gamma, beta), lane-padded at init
    c_out:  true (unpadded) output channel count
    """
    n, c_in = x.shape
    c_in_w, c_pad = w_pad.shape
    assert c_in_w == c_in, "weight/input channel mismatch"
    assert c_pad % LANE == 0 and c_pad >= c_out

    w_bytes = jnp.dtype(w_pad.dtype).itemsize
    out_bytes = jnp.dtype(out_dtype).itemsize
    budget = _vmem_budget_bytes()

    # Guard: the fused plan keeps x resident; if even the smallest tile does
    # not fit this generation's VMEM, fall back to a plain XLA path.
    # TODO(synk): add an N-tiled two-pass-BN Pallas path for very large N.
    if _per_step_vmem_bytes(n, c_in, LANE, w_bytes, out_bytes) > budget:
        y = jnp.dot(x, w_pad.astype(jnp.float32),
                    preferred_element_type=jnp.float32)
        mean = y.mean(axis=0, keepdims=True)
        var = ((y - mean) ** 2).mean(axis=0, keepdims=True)
        y = (y - mean) * (gb_pad[0:1] * jax.lax.rsqrt(var + BN_EPS)) + gb_pad[1:2]
        return jnp.maximum(y, 0.0).astype(out_dtype)[:, :c_out]

    tn = _pick_tile(n, c_in, c_pad, w_bytes, out_bytes, budget)
    grid = (c_pad // tn,)

    est = _per_step_vmem_bytes(n, c_in, tn, w_bytes, out_bytes)
    vmem_limit = int(min(max(2 * est, 4 << 20), budget))

    cost = pl.CostEstimate(
        flops=2 * n * c_in * c_pad,
        transcendentals=0,
        bytes_accessed=(n * c_in * 4
                        + c_in * c_pad * w_bytes
                        + 2 * c_pad * 4
                        + n * c_pad * out_bytes),
    )

    out_padded = pl.pallas_call(
        refine_block_kernel,
        out_shape=jax.ShapeDtypeStruct((n, c_pad), out_dtype),
        grid=grid,
        in_specs=[
            pl.BlockSpec((n, c_in), lambda j: (0, 0)),   # x (resident each step)
            pl.BlockSpec((c_in, tn), lambda j: (0, j)),  # weight tile (bf16 at rest)
            pl.BlockSpec((2, tn), lambda j: (0, j)),     # gamma/beta tile (coalesced)
        ],
        out_specs=pl.BlockSpec((n, tn), lambda j: (0, j)),
        compiler_params=pltpu.CompilerParams(
            dimension_semantics=("parallel",),
            vmem_limit_bytes=vmem_limit,
        ),
        cost_estimate=cost,
    )(x, w_pad, gb_pad)

    if c_pad != c_out:
        out_padded = out_padded[:, :c_out]   # keep padded layout downstream if possible
    return out_padded


def init_params(key, in_channel, out_channel, *, mm_dtype=jnp.bfloat16):
    """Deterministic init mirroring the PyTorch module's __init__.

    The Linear weight is stored pre-transposed, lane-padded, and pre-cast to
    bf16 ONCE here, so no per-call pad/cast/transpose appears in the jit graph.
    gamma/beta are stacked into one (2, C_pad) array (single DMA per step).
    The Linear bias is returned for reference/eval use but is not fed to the
    fused kernel (cancelled exactly by training-mode BN).
    """
    c_pad = ((out_channel + LANE - 1) // LANE) * LANE
    pad = c_pad - out_channel

    k_w, k_b = jax.random.split(key)
    # kaiming_normal_(mode='fan_out', nonlinearity='relu'): std = sqrt(2/out)
    std = (2.0 / out_channel) ** 0.5
    w_t = std * jax.random.normal(k_w, (in_channel, out_channel), jnp.float32)
    # nn.Linear default bias init: U(-1/sqrt(fan_in), 1/sqrt(fan_in))
    bound = 1.0 / (in_channel ** 0.5)
    bias = jax.random.uniform(k_b, (out_channel,), jnp.float32, -bound, bound)
    # BatchNorm1d: weight=1, bias=0
    gamma = jnp.ones((out_channel,), jnp.float32)
    beta = jnp.zeros((out_channel,), jnp.float32)

    w_pad = jnp.pad(w_t, ((0, 0), (0, pad))).astype(mm_dtype)
    gb_pad = jnp.stack(
        [jnp.pad(gamma, (0, pad), constant_values=1.0),
         jnp.pad(beta, (0, pad))], axis=0).astype(jnp.float32)   # (2, c_pad)
    return w_pad, gb_pad, bias


if __name__ == "__main__":
    # Small demo shapes consistent with the module: batch=8, in=32, out=64.
    N, C_IN, C_OUT = 8, 32, 64

    key = jax.random.PRNGKey(0)
    k_x, k_p = jax.random.split(key)
    x = jax.random.normal(k_x, (N, C_IN), jnp.float32)
    w_pad, gb_pad, bias = init_params(k_p, C_IN, C_OUT)

    out = refine_block(x, w_pad, gb_pad, c_out=C_OUT)
    out = jax.block_until_ready(out)
    assert out.shape == (N, C_OUT)

    # Pure-JAX reference of the full PyTorch module (Linear WITH bias ->
    # training-mode BatchNorm1d -> ReLU), using the same bf16-rounded matmul
    # operands. The fused kernel drops the Linear bias because the BN mean
    # subtraction cancels it exactly; results agree up to fp rounding.
    x_mm = x.astype(jnp.bfloat16).astype(jnp.float32)
    w_mm = w_pad[:, :C_OUT].astype(jnp.float32)
    gamma = gb_pad[0, :C_OUT]
    beta = gb_pad[1, :C_OUT]
    y_ref = x_mm @ w_mm + bias
    mean = y_ref.mean(axis=0, keepdims=True)
    var = ((y_ref - mean) ** 2).mean(axis=0, keepdims=True)
    y_ref = (y_ref - mean) / jnp.sqrt(var + BN_EPS) * gamma + beta
    y_ref = jnp.maximum(y_ref, 0.0)
    assert jnp.allclose(out, y_ref, atol=2e-3, rtol=2e-3), "mismatch vs reference"

    print("KERNEL_OK")
</pallas_src>

<mosaic_0001>
module attributes {stable_mosaic.version = 11 : i64} {
  func.func @refine_block_kernel(%arg0: i32, %arg1: memref<8x32xf32, #tpu.memory_space<vmem>>, %arg2: memref<32x128xbf16, #tpu.memory_space<vmem>>, %arg3: memref<2x128xf32, #tpu.memory_space<vmem>>, %arg4: memref<8x128xf32, #tpu.memory_space<vmem>>) attributes {dimension_semantics = [#tpu.dimension_semantics<parallel>], iteration_bounds = array<i64: 1>, scalar_prefetch = 0 : i64, scratch_operands = 0 : i64, tpu.core_type = #tpu.core_type<tc>, window_params = [{pipeline_mode = #tpu.pipeline_mode<synchronous>, transform_indices = @transform_0, window_bounds = array<i64: 8, 32>}, {transform_indices = @transform_1, window_bounds = array<i64: 32, 128>}, {transform_indices = @transform_2, window_bounds = array<i64: 2, 128>}, {transform_indices = @transform_3, window_bounds = array<i64: 8, 128>}]} {
    %c0 = arith.constant 0 : index
    %c0_0 = arith.constant 0 : index
    %0 = vector.load %arg1[%c0, %c0_0] : memref<8x32xf32, #tpu.memory_space<vmem>>, vector<8x32xf32>
    %1 = arith.truncf %0 : vector<8x32xf32> to vector<8x32xbf16>
    %c0_1 = arith.constant 0 : index
    %c0_2 = arith.constant 0 : index
    %2 = vector.load %arg2[%c0_1, %c0_2] : memref<32x128xbf16, #tpu.memory_space<vmem>>, vector<32x128xbf16>
    %cst = arith.constant dense<0.000000e+00> : vector<8x128xf32>
    %3 = tpu.matmul %1, %2, %cst {dimension_numbers = #tpu.dot_dimension_numbers<[1], [0], [0], [1], [0, 0, 1, 1], [], []>} : vector<8x32xbf16>, vector<32x128xbf16>, vector<8x128xf32> -> vector<8x128xf32>
    %cst_3 = arith.constant dense<0.000000e+00> : vector<128xf32>
    %4 = vector.multi_reduction <add>, %3, %cst_3 [0] : vector<8x128xf32> to vector<128xf32>
    %5 = vector.shape_cast %4 : vector<128xf32> to vector<1x128xf32>
    %cst_4 = arith.constant 1.250000e-01 : f32
    %6 = vector.broadcast %cst_4 : f32 to vector<1x128xf32>
    %7 = arith.mulf %5, %6 : vector<1x128xf32>
    %8 = vector.broadcast %7 : vector<1x128xf32> to vector<8x128xf32>
    %9 = arith.subf %3, %8 : vector<8x128xf32>
    %10 = arith.mulf %9, %9 : vector<8x128xf32>
    %cst_5 = arith.constant dense<0.000000e+00> : vector<128xf32>
    %11 = vector.multi_reduction <add>, %10, %cst_5 [0] : vector<8x128xf32> to vector<128xf32>
    %12 = vector.shape_cast %11 : vector<128xf32> to vector<1x128xf32>
    %cst_6 = arith.constant 1.250000e-01 : f32
    %13 = vector.broadcast %cst_6 : f32 to vector<1x128xf32>
    %14 = arith.mulf %12, %13 : vector<1x128xf32>
    %c0_7 = arith.constant 0 : index
    %c0_8 = arith.constant 0 : index
    %15 = vector.load %arg3[%c0_7, %c0_8] : memref<2x128xf32, #tpu.memory_space<vmem>>, vector<2x128xf32>
    %16 = vector.extract_strided_slice %15 {offsets = [0, 0], sizes = [1, 128], strides = [1, 1]} : vector<2x128xf32> to vector<1x128xf32>
    %17 = vector.extract_strided_slice %15 {offsets = [1, 0], sizes = [1, 128], strides = [1, 1]} : vector<2x128xf32> to vector<1x128xf32>
    %cst_9 = arith.constant 9.99999974E-6 : f32
    %18 = vector.broadcast %cst_9 : f32 to vector<1x128xf32>
    %19 = arith.addf %14, %18 : vector<1x128xf32>
    %20 = math.rsqrt %19 : vector<1x128xf32>
    %21 = arith.mulf %16, %20 : vector<1x128xf32>
    %22 = vector.broadcast %21 : vector<1x128xf32> to vector<8x128xf32>
    %23 = arith.mulf %9, %22 : vector<8x128xf32>
    %24 = vector.broadcast %17 : vector<1x128xf32> to vector<8x128xf32>
    %25 = arith.addf %23, %24 : vector<8x128xf32>
    %cst_10 = arith.constant 0.000000e+00 : f32
    %26 = vector.broadcast %cst_10 : f32 to vector<8x128xf32>
    %27 = arith.maximumf %25, %26 : vector<8x128xf32>
    %c0_11 = arith.constant 0 : index
    %c0_12 = arith.constant 0 : index
    %28 = vector.load %arg4[%c0_11, %c0_12] : memref<8x128xf32, #tpu.memory_space<vmem>>, vector<8x128xf32>
    tpu.vector_store %arg4[%c0_11, %c0_12], %27 {strides = array<i32>} : memref<8x128xf32, #tpu.memory_space<vmem>>, vector<8x128xf32>,
    return
  }
  func.func @transform_0(%arg0: i32) -> (i32, i32) {
    %c0_i32 = arith.constant 0 : i32
    %c0_i32_0 = arith.constant 0 : i32
    %c0_i32_1 = arith.constant 0 : i32
    return %c0_i32, %c0_i32_0 : i32, i32
  }
  func.func @transform_1(%arg0: i32) -> (i32, i32) {
    %c0_i32 = arith.constant 0 : i32
    %c0_i32_0 = arith.constant 0 : i32
    return %c0_i32, %arg0 : i32, i32
  }
  func.func @transform_2(%arg0: i32) -> (i32, i32) {
    %c0_i32 = arith.constant 0 : i32
    %c0_i32_0 = arith.constant 0 : i32
    return %c0_i32, %arg0 : i32, i32
  }
  func.func @transform_3(%arg0: i32) -> (i32, i32) {
    %c0_i32 = arith.constant 0 : i32
    %c0_i32_0 = arith.constant 0 : i32
    return %c0_i32, %arg0 : i32, i32
  }
}

</mosaic_0001>

<llo_original>
// kernel: refine_block.1
$region0: #{refine_block.1}
  #allocation0 [shape = 'u32[]', space=smem, size = 0x4, offset = 0x4, fixed_abs, tag = 'smem constant byte address 0x4 - core index']
  #allocation1 [shape = 'u32[144,128]{1,0:T(1,128)}', space=vmem, size = 0x12000, scoped, tag = 'internal scratch']
  %s0 = inlined_call_operand.hbm [shape: f32[8,32], index: 0, kind: input, shape index: {}]
  %s1 = inlined_call_operand.hbm [shape: bf16[32,128], index: 1, kind: input, shape index: {}]
  %s2 = inlined_call_operand.vmem [shape: f32[2,128], index: 2, kind: input, shape index: {}]
  %s3 = inlined_call_operand.hbm [shape: f32[8,128], index: 3, kind: output, shape index: {}]
  %s4 = sld [smem:[#allocation0]]
  $region30: #{refine_block.1} parent=0
    _
  %s6 = ssub.s32 1, %s4
  %s7 = scalar_select 0, %s6, %s4
  $region1: #{refine_block.1} parent=0
    #allocation2 [shape = 'u8[4096]{0}', space=vmem, size = 0x1000, scoped, tag = 'input window, operand 0, single buffered']
    #allocation3 [shape = 's32[1]{0}', space=sflag, size = 0x4, scoped, tag = 'scoped memory for refine_block.1']
    #allocation4 [shape = 's32[1]{0}', space=sflag, size = 0x4, scoped, tag = 'scoped memory for refine_block.1']
    #allocation5 [shape = 'u8[8192]{0}', space=vmem, size = 0x2000, scoped, tag = 'input window, operand 1, single buffered']
    #allocation6 [shape = 's32[1]{0}', space=sflag, size = 0x4, scoped, tag = 'scoped memory for refine_block.1']
    #allocation7 [shape = 'u8[4096]{0}', space=vmem, size = 0x1000, scoped, tag = 'output window, operand 0, single buffered']
    %8 = vsyncpa [#allocation3], 0
    %9 = vsyncpa [#allocation6], 0
    %10 = vsyncpa [#allocation4], 0
    // Predicated region
    $region2: #{refine_block.1} parent=1 // pred_check
      _
    $region3: #{refine_block.1} parent=1 // pred_check_branch
      %12 = sbr.rel (0) target = $region5
    $region4: #{refine_block.1} parent=1 // pred_region
      %s14 = ssub.s32 128, 128
      %15 = vsyncadd [#allocation3], %s14
      %s17 = sshll.u32 [#allocation2], 4
      %s18 = int_to_ptr.vmem [resolvable:$true] %s17
      %20 = dma.hbm_to_vmem [thread:$0]  %s0, 128, %s18, [#allocation3]
    $region5: #{refine_block.1} parent=1 // pred_fallthru
      _
    // Predicated region
    $region6: #{refine_block.1} parent=1 // pred_check
      _
    $region7: #{refine_block.1} parent=1 // pred_check_branch
      %22 = sbr.rel (0) target = $region9
    $region8: #{refine_block.1} parent=1 // pred_region
      %s24 = ssub.s32 256, 256
      %25 = vsyncadd [#allocation6], %s24
      %s26 = sshll.u32 [#allocation5], 4
      %s27 = int_to_ptr.vmem [resolvable:$true] %s26
      %32 = dma.hbm_to_vmem [thread:$0]  %s1, 256, %s27, [#allocation6], 64, 64, 4
    $region9: #{refine_block.1} parent=1 // pred_fallthru
      _
    // Predicated region
    $region10: #{refine_block.1} parent=1 // pred_check
      _
    $region11: #{refine_block.1} parent=1 // pred_check_branch
      %34 = sbr.rel (0) target = $region13
    $region12: #{refine_block.1} parent=1 // pred_region
      _
    $region13: #{refine_block.1} parent=1 // pred_fallthru
      _
    // Predicated region
    $region14: #{refine_block.1} parent=1 // pred_check
      _
    $region15: #{refine_block.1} parent=1 // pred_check_branch
      %36 = sbr.rel (0) target = $region17
    $region16: #{refine_block.1} parent=1 // pred_region
      %37 = dma.done [#allocation3], 128
    $region17: #{refine_block.1} parent=1 // pred_fallthru
      _
    // Predicated region
    $region18: #{refine_block.1} parent=1 // pred_check
      _
    $region19: #{refine_block.1} parent=1 // pred_check_branch
      %39 = sbr.rel (0) target = $region21
    $region20: #{refine_block.1} parent=1 // pred_region
      %40 = dma.done [#allocation6], 256
    $region21: #{refine_block.1} parent=1 // pred_fallthru
      _
    %v42 = vld [vmem:[#allocation2] sm:$0xff]
    %v43 = vpack.c.bf16 %v42, %v42
    %v44 = vld [vmem:[#allocation5] sm:$0xf]
    %v45 = vld [vmem:[#allocation5 + $0x4] sm:$0xf]
    %v46 = vld [vmem:[#allocation5 + $0x8] sm:$0xf]
    %v47 = vld [vmem:[#allocation5 + $0xc] sm:$0xf]
    %v52 = vunpack.c.l.b16 %v44
    %v53 = vunpack.c.l.b16 %v45
    %v54 = vunpack.c.l.b16 %v46
    %v55 = vunpack.c.l.b16 %v47
    %v56 = vpack.c.b16 %v53, %v52
    %v57 = vpack.c.b16 %v55, %v54
    %vm60 = vcmask 261120
    %v62 = vsel %vm60, %v43, 0
    %64 = vmatprep.subr.bf16.mxu0 0
    %65 = vmatpush1.bf16.msra.mxu0 %v56
    %66 = vmatprep.subr.bf16.mxu0 0
    %67 = vmatpush1.bf16.msra.mxu0 %v57
    %68 = vmatprep.subr.bf16.mxu0 0
    %69 = vmatpush1.bf16.msra.mxu0 0
    %70 = vmatprep.subr.bf16.mxu0 0
    %71 = vmatpush1.bf16.msra.mxu0 0
    %72 = vmatprep.subr.bf16.mxu0 0
    %73 = vmatpush1.bf16.msra.mxu0 0
    %74 = vmatprep.subr.bf16.mxu0 0
    %75 = vmatpush1.bf16.msra.mxu0 0
    %76 = vmatprep.subr.bf16.mxu0 0
    %77 = vmatpush1.bf16.msra.mxu0 0
    %78 = vmatprep.subr.bf16.mxu0 0
    %79 = vmatpush1.bf16.msra.mxu0 0
    %80 = vmatprep.subr.bf16.mxu0 0
    %81 = vmatpush1.bf16.msra.mxu0 0
    %82 = vmatprep.subr.bf16.mxu0 0
    %83 = vmatpush1.bf16.msra.mxu0 0
    %84 = vmatprep.subr.bf16.mxu0 0
    %85 = vmatpush1.bf16.msra.mxu0 0
    %86 = vmatprep.subr.bf16.mxu0 0
    %87 = vmatpush1.bf16.msra.mxu0 0
    %88 = vmatprep.subr.bf16.mxu0 0
    %89 = vmatpush1.bf16.msra.mxu0 0
    %90 = vmatprep.subr.bf16.mxu0 0
    %91 = vmatpush1.bf16.msra.mxu0 0
    %92 = vmatprep.subr.bf16.mxu0 0
    %93 = vmatpush1.bf16.msra.mxu0 0
    %94 = vmatprep.subr.bf16.mxu0 0
    %95 = vmatpush1.bf16.msra.mxu0 0
    %96 = vmatprep.mubr.bf16.mxu0 0
    %97 = vmatmul.mubr.bf16.gmra.mrb[0].mxu0 %v62
    %v98 = vpop.f32.mrb[0].mxu0
    %v99 = vadd.f32 0.0, %v98
    %v100 = vpop.f32.mrb[0].mxu0
    %v101 = vpop.f32.mrb[0].mxu0
    %v102 = vpop.f32.mrb[0].mxu0
    %103 = vdwg.mxu0
    %v104 = vrot.slane %v99, 4
    %v105 = vadd.f32 %v99, %v104
    %v106 = vrot.slane %v105, 2
    %v107 = vadd.f32 %v105, %v106
    %v108 = vrot.slane %v107, 1
    %v109 = vadd.f32 %v107, %v108
    %v110 = vmul.f32 %v109, 0.125
    %v111 = vsub.f32 %v99, %v110
    %v112 = vmul.f32 %v111, %v111
    %v113 = vrot.slane %v112, 4
    %v114 = vadd.f32 %v112, %v113
    %v115 = vrot.slane %v114, 2
    %v116 = vadd.f32 %v114, %v115
    %v117 = vrot.slane %v116, 1
    %v118 = vadd.f32 %v116, %v117
    %v119 = vmul.f32 %v118, 0.125
    %v120 = vld [vmem:[%s2] sm:$0x3]
    %v121 = vadd.f32 %v119, 1e-05
    %v122 = vrsqrt.pop %v121
    %v123 = vmul.f32 %v120, %v122
    %v124 = vlaneseq
    %v125 = vshrl.u32 %v124, 7
    %v126 = vsub.s32 0, %v125
    %v127 = vrot.slane %v123, %v126
    %v128 = vmul.f32 %v111, %v127
    %v129 = vlaneseq
    %v130 = vshrl.u32 %v129, 7
    %v131 = vsub.s32 1, %v130
    %v132 = vrot.slane %v120, %v131
    %v133 = vadd.f32 %v128, %v132
    %v134 = vmax.f32 %v133, 0.0
    %135 = vst [vmem:[#allocation7] sm:$0xff] %v134
    // Predicated region
    $region22: #{refine_block.1} parent=1 // pred_check
      _
    $region23: #{refine_block.1} parent=1 // pred_check_branch
      %137 = sbr.rel (0) target = $region25
    $region24: #{refine_block.1} parent=1 // pred_region
      %s139 = ssub.s32 128, 128
      %140 = vsyncadd [#allocation4], %s139
      %s142 = sshll.u32 [#allocation7], 4
      %s143 = int_to_ptr.vmem [resolvable:$true] %s142
      %145 = dma.vmem_to_hbm [thread:$0]  %s143, 128, %s3, [#allocation4]
    $region25: #{refine_block.1} parent=1 // pred_fallthru
      _
    // Predicated region
    $region26: #{refine_block.1} parent=1 // pred_check
      _
    $region27: #{refine_block.1} parent=1 // pred_check_branch
      %147 = sbr.rel (0) target = $region29
    $region28: #{refine_block.1} parent=1 // pred_region
      %148 = dma.done [#allocation4], 128
    $region29: #{refine_block.1} parent=1 // pred_fallthru
      _
    %149 = vsyncpa [#allocation3], 1
    %150 = vsyncpa [#allocation6], 1
    %151 = vsyncpa [#allocation4], 1

</llo_original>
